<compile_context>
chip_gen: v7x
topology: tpu7x:2x2x1
jax: 0.10.0
libtpu: 0.0.40
codegen_flags: <defaults>
</compile_context>

<pallas_src>
import jax
import jax.numpy as jnp
from jax.experimental import pallas as pl
from jax.experimental.pallas import tpu as pltpu


def _skip_linear_kernel(x_ref, wt_ref, b_ref, o_ref):
    """o = x + (x @ W^T + b) for one (TM, H) row tile.

    wt_ref holds the already-transposed weight (H_in, H_out), so the
    contraction is a plain ((1,),(0,)) matmul — no in-kernel transpose.
    """
    x = x_ref[...]                                          # (TM, H) f32
    y = jnp.dot(x, wt_ref[...],
                preferred_element_type=jnp.float32)         # (TM, H) on MXU
    o_ref[...] = (x + y + b_ref[...]).astype(o_ref.dtype)   # fused bias + skip


def _pick_tm(M: int) -> int:
    """Row-tile size: multiple of 8, balanced across 2 TCs for small/med M."""
    if M < 8:
        # Block sublane dim must be a multiple of 8 OR equal the full dim.
        return M
    if M <= 1024:
        # Two ~equal tiles so v7x's two TensorCores get balanced work
        # (harmless single extra grid step on 1-TC v5e/v6e).
        return ((pl.cdiv(M, 2) + 7) // 8) * 8
    # Large M: 512 rows ~ measured ~85% of HBM roofline, safe on all gens.
    return 512


def skip_connection_simple(input_0, input_1, weight, bias):
    """
    input_0 : (B, S, H) float32
    input_1 : any array (passed through unchanged)
    weight  : (H_out, H_in) float32  (PyTorch nn.Linear convention)
    bias    : (H_out,) float32
    Returns (input_0 + Linear(input_0), input_1).
    """
    B, S, H = input_0.shape
    H_out, H_in = weight.shape
    assert H_out == H_in == H, (
        "SkipConnectionSimple requires a square Linear matching the hidden dim")
    assert bias.shape == (H,)

    M = B * S
    x2d = input_0.reshape(M, H)          # free reshape (leading-dim merge)
    w_t = weight.T                       # one-time (H,H) copy; kernel does x @ w_t
    b2d = bias.reshape(1, H)

    TM = _pick_tm(M)
    num_tiles = pl.cdiv(M, TM)

    cost = pl.CostEstimate(
        flops=2 * M * H * H,
        transcendentals=0,
        bytes_accessed=4 * (2 * M * H + H * H + H),
    )

    out2d = pl.pallas_call(
        _skip_linear_kernel,
        out_shape=jax.ShapeDtypeStruct((M, H), input_0.dtype),
        grid=(num_tiles,),
        in_specs=[
            pl.BlockSpec((TM, H), lambda i: (i, 0)),   # x: pipelined row tiles
            pl.BlockSpec((H, H), lambda i: (0, 0)),    # W^T: VMEM-resident
            pl.BlockSpec((1, H), lambda i: (0, 0)),    # bias: VMEM-resident
        ],
        # Edge block (M % TM != 0) is read-padded / store-masked by Pallas.
        out_specs=pl.BlockSpec((TM, H), lambda i: (i, 0)),
        compiler_params=pltpu.CompilerParams(
            dimension_semantics=("parallel",)),        # megacore sharding (v7x)
        cost_estimate=cost,
    )(x2d, w_t, b2d)

    out0 = out2d.reshape(B, S, H)
    # input_1 is returned as-is (identity pass-through), per the module.
    return out0, input_1


def _reference(input_0, input_1, weight, bias):
    res1 = jnp.einsum("bsh,oh->bso", input_0, weight) + bias
    return input_0 + res1, input_1


if __name__ == "__main__":
    # M = B*S = 600 -> TM = 304, 2 balanced row tiles; the second tile is
    # partial (296 rows), exercising Pallas's masked edge-block path.
    B, S, H = 2, 300, 128

    key = jax.random.PRNGKey(0)
    k0, k1, kw, kb = jax.random.split(key, 4)

    input_0 = jax.random.normal(k0, (B, S, H), dtype=jnp.float32)
    input_1 = jax.random.normal(k1, (B, S, H), dtype=jnp.float32)

    # Deterministic nn.Linear(H, H)-style init (uniform in +-1/sqrt(H)).
    bound = 1.0 / (H ** 0.5)
    weight = jax.random.uniform(kw, (H, H), jnp.float32, -bound, bound)
    bias = jax.random.uniform(kb, (H,), jnp.float32, -bound, bound)

    out0, out1 = skip_connection_simple(input_0, input_1, weight, bias)
    jax.block_until_ready((out0, out1))

    ref0, ref1 = _reference(input_0, input_1, weight, bias)
    assert out0.shape == (B, S, H) and out0.dtype == jnp.float32
    assert jnp.allclose(out0, ref0, atol=1e-4, rtol=1e-4)
    assert jnp.array_equal(out1, ref1)

    print("KERNEL_OK")
</pallas_src>

<mosaic_0001>
module attributes {stable_mosaic.version = 11 : i64} {
  func.func @_skip_linear_kernel(%arg0: i32, %arg1: memref<304x128xf32, #tpu.memory_space<vmem>>, %arg2: memref<128x128xf32, #tpu.memory_space<vmem>>, %arg3: memref<1x128xf32, #tpu.memory_space<vmem>>, %arg4: memref<304x128xf32, #tpu.memory_space<vmem>>) attributes {dimension_semantics = [#tpu.dimension_semantics<parallel>], iteration_bounds = array<i64: 2>, scalar_prefetch = 0 : i64, scratch_operands = 0 : i64, tpu.core_type = #tpu.core_type<tc>, window_params = [{transform_indices = @transform_0, window_bounds = array<i64: 304, 128>}, {pipeline_mode = #tpu.pipeline_mode<synchronous>, transform_indices = @transform_1, window_bounds = array<i64: 128, 128>}, {pipeline_mode = #tpu.pipeline_mode<synchronous>, transform_indices = @transform_2, window_bounds = array<i64: 1, 128>}, {transform_indices = @transform_3, window_bounds = array<i64: 304, 128>}]} {
    %c0 = arith.constant 0 : index
    %c0_0 = arith.constant 0 : index
    %0 = vector.load %arg1[%c0, %c0_0] : memref<304x128xf32, #tpu.memory_space<vmem>>, vector<304x128xf32>
    %c0_1 = arith.constant 0 : index
    %c0_2 = arith.constant 0 : index
    %1 = vector.load %arg2[%c0_1, %c0_2] : memref<128x128xf32, #tpu.memory_space<vmem>>, vector<128x128xf32>
    %cst = arith.constant dense<0.000000e+00> : vector<304x128xf32>
    %2 = tpu.matmul %0, %1, %cst {dimension_numbers = #tpu.dot_dimension_numbers<[1], [0], [0], [1], [0, 0, 1, 1], [], []>} : vector<304x128xf32>, vector<128x128xf32>, vector<304x128xf32> -> vector<304x128xf32>
    %3 = arith.addf %0, %2 : vector<304x128xf32>
    %c0_3 = arith.constant 0 : index
    %c0_4 = arith.constant 0 : index
    %4 = vector.load %arg3[%c0_3, %c0_4] : memref<1x128xf32, #tpu.memory_space<vmem>>, vector<1x128xf32>
    %5 = vector.broadcast %4 : vector<1x128xf32> to vector<304x128xf32>
    %6 = arith.addf %3, %5 : vector<304x128xf32>
    %c0_5 = arith.constant 0 : index
    %c0_6 = arith.constant 0 : index
    %7 = vector.load %arg4[%c0_5, %c0_6] : memref<304x128xf32, #tpu.memory_space<vmem>>, vector<304x128xf32>
    tpu.vector_store %arg4[%c0_5, %c0_6], %6 {strides = array<i32>} : memref<304x128xf32, #tpu.memory_space<vmem>>, vector<304x128xf32>,
    return
  }
  func.func @transform_0(%arg0: i32) -> (i32, i32) {
    %c0_i32 = arith.constant 0 : i32
    %c0_i32_0 = arith.constant 0 : i32
    return %arg0, %c0_i32 : i32, i32
  }
  func.func @transform_1(%arg0: i32) -> (i32, i32) {
    %c0_i32 = arith.constant 0 : i32
    %c0_i32_0 = arith.constant 0 : i32
    %c0_i32_1 = arith.constant 0 : i32
    return %c0_i32, %c0_i32_0 : i32, i32
  }
  func.func @transform_2(%arg0: i32) -> (i32, i32) {
    %c0_i32 = arith.constant 0 : i32
    %c0_i32_0 = arith.constant 0 : i32
    %c0_i32_1 = arith.constant 0 : i32
    return %c0_i32, %c0_i32_0 : i32, i32
  }
  func.func @transform_3(%arg0: i32) -> (i32, i32) {
    %c0_i32 = arith.constant 0 : i32
    %c0_i32_0 = arith.constant 0 : i32
    return %arg0, %c0_i32 : i32, i32
  }
}

</mosaic_0001>

<llo_original>
// kernel: tpu_custom_call.1
$region0: #{tpu_custom_call.1}
  #allocation0 [shape = 'u32[]', space=smem, size = 0x4, offset = 0x4, fixed_abs, tag = 'smem constant byte address 0x4 - core index']
  #allocation1 [shape = 'u32[144,128]{1,0:T(1,128)}', space=vmem, size = 0x12000, scoped, tag = 'internal scratch']
  %s0 = inlined_call_operand.hbm [shape: f32[600,128], index: 0, kind: input, shape index: {}]
  %s1 = inlined_call_operand.hbm [shape: f32[128,128], index: 1, kind: input, shape index: {}]
  %s2 = inlined_call_operand.vmem [shape: f32[1,128], index: 2, kind: input, shape index: {}]
  %s3 = inlined_call_operand.hbm [shape: f32[600,128], index: 3, kind: output, shape index: {}]
  %s4 = sld [smem:[#allocation0]]
  $region53: #{tpu_custom_call.1} parent=0
    _
  %s6 = ssub.s32 1, %s4
  %s7 = scalar_select 0, %s6, %s4
  $region1: #{tpu_custom_call.1} parent=0
    #allocation2 [shape = 'u8[311296]{0}', space=vmem, size = 0x4c000, scoped, tag = 'input window, operand 0']
    #allocation3 [shape = 's32[2]{0}', space=sflag, size = 0x8, scoped, tag = 'scoped memory for tpu_custom_call.1']
    #allocation4 [shape = 's32[2]{0}', space=sflag, size = 0x8, scoped, tag = 'scoped memory for tpu_custom_call.1']
    #allocation5 [shape = 'u8[65536]{0}', space=vmem, size = 0x10000, scoped, tag = 'input window, operand 1, single buffered']
    #allocation6 [shape = 's32[1]{0}', space=sflag, size = 0x4, scoped, tag = 'scoped memory for tpu_custom_call.1']
    #allocation7 [shape = 'u8[311296]{0}', space=vmem, size = 0x4c000, scoped, tag = 'output window, operand 0']
    %8 = vsyncpa [#allocation3], 0
    %s9 = scalar_lea.sflag [#allocation3], 1
    %10 = vsyncpa %s9, 0
    %11 = vsyncpa [#allocation6], 0
    %12 = vsyncpa [#allocation4], 0
    %s13 = scalar_lea.sflag [#allocation4], 1
    %14 = vsyncpa %s13, 0
    loop: start=0, step=1, limit=4
    $region2: #{tpu_custom_call.1} parent=1 // loop_pre_header
      _
    $region3: #{tpu_custom_call.1} parent=1 // loop_header
      %s16 = sphi 0, %s20
      %p17 = scmp.ge.s32.totalorder %s16, 4
      %s26 = sphi 0, %s28
      %s29 = sphi 0, %s26
      %s30 = sphi 0, %s29
      %s46 = sphi 0, %s30
      %s50 = sphi 0, %s50
      %s52 = sphi 0, %s50
      %s53 = sphi 0, %s52
      %s67 = sphi 0, %s53
      %s71 = sphi 0, %s71
      %s73 = sphi 0, %s71
      %s74 = sphi 0, %s73
      %s88 = sphi 0, %s74
      %s94 = sphi 0, %s96
      %s97 = sphi 0, %s94
      %s98 = sphi 0, %s97
      %s114 = sphi 0, %s98
    $region4: #{tpu_custom_call.1} parent=1 // loop_header_branch
      %19 = sbr.rel (%p17) target = $region8
    $region5: #{tpu_custom_call.1} parent=1 // loop_body
      %s21 = ssub.s32 %s16, 1
      %s22 = ssub.s32 %s16, 2
      %s23 = sadd.s32 %s16, 1
      %s24 = ssub.s32 %s16, %s23
      %p25 = scmp.eq.s32.totalorder %s24, 0
      %s27 = sadd.s32 %s26, 1
      %s28 = scalar_select %p25, %s26, %s27
      %p31 = pneg %p25
      %p32 = scmp.eq.s32.totalorder %s16, 1
      %p33 = por %p31, %p32
      %p34 = scmp.ne.s32.totalorder %s26, %s29
      %p35 = scmp.eq.s32.totalorder %s16, 0
      %p36 = por %p34, %p35
      %p37 = scmp.ne.s32.totalorder %s26, %s29
      %p38 = scmp.eq.s32.totalorder %s21, 1
      %p39 = por %p37, %p38
      %p40 = scmp.ne.s32.totalorder %s29, %s30
      %p41 = scmp.eq.s32.totalorder %s21, 0
      %p42 = por %p40, %p41
      %p43 = scmp.ne.s32.totalorder %s29, %s30
      %p44 = scmp.eq.s32.totalorder %s22, 1
      %p45 = por %p43, %p44
      %p47 = scmp.ne.s32.totalorder %s30, %s46
      %p48 = scmp.eq.s32.totalorder %s22, 0
      %p49 = por %p47, %p48
      %s51 = sadd.s32 %s50, 1
      %p54 = scmp.eq.s32.totalorder %s16, 1
      %p55 = scmp.ne.s32.totalorder %s50, %s52
      %p56 = scmp.eq.s32.totalorder %s16, 0
      %p57 = por %p55, %p56
      %p58 = scmp.ne.s32.totalorder %s50, %s52
      %p59 = scmp.eq.s32.totalorder %s21, 1
      %p60 = por %p58, %p59
      %p61 = scmp.ne.s32.totalorder %s52, %s53
      %p62 = scmp.eq.s32.totalorder %s21, 0
      %p63 = por %p61, %p62
      %p64 = scmp.ne.s32.totalorder %s52, %s53
      %p65 = scmp.eq.s32.totalorder %s22, 1
      %p66 = por %p64, %p65
      %p68 = scmp.ne.s32.totalorder %s53, %s67
      %p69 = scmp.eq.s32.totalorder %s22, 0
      %p70 = por %p68, %p69
      %s72 = sadd.s32 %s71, 1
      %p75 = scmp.eq.s32.totalorder %s16, 1
      %p76 = scmp.ne.s32.totalorder %s71, %s73
      %p77 = scmp.eq.s32.totalorder %s16, 0
      %p78 = por %p76, %p77
      %p79 = scmp.ne.s32.totalorder %s71, %s73
      %p80 = scmp.eq.s32.totalorder %s21, 1
      %p81 = por %p79, %p80
      %p82 = scmp.ne.s32.totalorder %s73, %s74
      %p83 = scmp.eq.s32.totalorder %s21, 0
      %p84 = por %p82, %p83
      %p85 = scmp.ne.s32.totalorder %s73, %s74
      %p86 = scmp.eq.s32.totalorder %s22, 1
      %p87 = por %p85, %p86
      %p89 = scmp.ne.s32.totalorder %s74, %s88
      %p90 = scmp.eq.s32.totalorder %s22, 0
      %p91 = por %p89, %p90
      %s92 = ssub.s32 %s16, %s23
      %p93 = scmp.eq.s32.totalorder %s92, 0
      %s95 = sadd.s32 %s94, 1
      %s96 = scalar_select %p93, %s94, %s95
      %p99 = pneg %p93
      %p100 = scmp.eq.s32.totalorder %s16, 1
      %p101 = por %p99, %p100
      %p102 = scmp.ne.s32.totalorder %s94, %s97
      %p103 = scmp.eq.s32.totalorder %s16, 0
      %p104 = por %p102, %p103
      %p105 = scmp.ne.s32.totalorder %s94, %s97
      %p106 = scmp.eq.s32.totalorder %s21, 1
      %p107 = por %p105, %p106
      %p108 = scmp.ne.s32.totalorder %s97, %s98
      %p109 = scmp.eq.s32.totalorder %s21, 0
      %p110 = por %p108, %p109
      %p111 = scmp.ne.s32.totalorder %s97, %s98
      %p112 = scmp.eq.s32.totalorder %s22, 1
      %p113 = por %p111, %p112
      %p115 = scmp.ne.s32.totalorder %s98, %s114
      %p116 = scmp.eq.s32.totalorder %s22, 0
      %p117 = por %p115, %p116
      %p118 = scmp.le.s32.totalorder 1, %s16
      %p119 = scmp.lt.s32.totalorder %s16, 3
      %p120 = pnand %p118, %p119
      %p121 = pneg %p120
      // Predicated region
      $region9: #{tpu_custom_call.1} parent=5 // pred_check
        _
      $region10: #{tpu_custom_call.1} parent=5 // pred_check_branch
        %123 = sbr.rel (%p120) target = $region12
      $region11: #{tpu_custom_call.1} parent=5 // pred_region
        %s124 = ssub.s32 %s16, 1
        // Predicated region
        $region13: #{tpu_custom_call.1} parent=11 // pred_check
          %p125 = pneg %p63
        $region14: #{tpu_custom_call.1} parent=11 // pred_check_branch
          %127 = sbr.rel (%p125) target = $region16
        $region15: #{tpu_custom_call.1} parent=11 // pred_region
          %s129 = ssub.s32 2048, 2048
          %130 = vsyncadd [#allocation6], %s129
          %s131 = sshll.u32 [#allocation5], 4
          %s132 = int_to_ptr.vmem [resolvable:$true] %s131
          %137 = dma.hbm_to_vmem [thread:$0]  %s1, 2048, %s132, [#allocation6], 128, 128, 8
        $region16: #{tpu_custom_call.1} parent=11 // pred_fallthru
          _
        // Predicated region
        $region17: #{tpu_custom_call.1} parent=11 // pred_check
          %p138 = pneg %p84
        $region18: #{tpu_custom_call.1} parent=11 // pred_check_branch
          %140 = sbr.rel (%p138) target = $region20
        $region19: #{tpu_custom_call.1} parent=11 // pred_region
          _
        $region20: #{tpu_custom_call.1} parent=11 // pred_fallthru
          _
      $region12: #{tpu_custom_call.1} parent=5 // pred_fallthru
        _
      %p141 = scmp.lt.s32.totalorder %s16, 2
      // Predicated region
      $region21: #{tpu_custom_call.1} parent=5 // pred_check
        %p142 = pneg %p141
      $region22: #{tpu_custom_call.1} parent=5 // pred_check_branch
        %144 = sbr.rel (%p142) target = $region24
      $region23: #{tpu_custom_call.1} parent=5 // pred_region
        // Predicated region
        $region25: #{tpu_custom_call.1} parent=23 // pred_check
          %p145 = pneg %p36
        $region26: #{tpu_custom_call.1} parent=23 // pred_check_branch
          %147 = sbr.rel (%p145) target = $region28
        $region27: #{tpu_custom_call.1} parent=23 // pred_region
          %s148 = sand.u32 %s26, 1
          %s149 = scalar_lea.sflag [#allocation3], %s148
          %s150 = sand.u32 %s26, 1
          %s151 = smul.addr %s150, 304
          %s152 = scalar_lea.vmem [#allocation2], %s151
          %s153 = smul.u32 38, %s16
          %s154 = ssub.s32 75, %s153
          %p155 = scmp.lt.s32.totalorder %s154, 38
          %s156 = scalar_select %p155, %s154, 38
          %s157 = smul.u32 128, %s156
          %s159 = ssub.s32 4864, %s157
          %160 = vsyncadd %s149, %s159
          %p161 = scmp.ne.s32.totalorder 0, %s157
          %s162 = smul.addr %s153, 128
          %s163 = scalar_lea.hbm %s0, %s162
          %s164 = smul.u32 8, %s156
          %s165 = sshll.u32 %s152, 4
          %s166 = int_to_ptr.vmem [resolvable:$true] %s165
          %s167 = sshll.u32 %s164, 4
          %171 = dma.hbm_to_vmem [thread:$0]  (%p161), %s163, %s167, %s166, %s149, 128, 128, 8
        $region28: #{tpu_custom_call.1} parent=23 // pred_fallthru
          _
      $region24: #{tpu_custom_call.1} parent=5 // pred_fallthru
        _
      %p172 = scmp.le.s32.totalorder 1, %s16
      %p173 = scmp.lt.s32.totalorder %s16, 3
      %p174 = pnand %p172, %p173
      %p175 = pneg %p174
      // Predicated region
      $region29: #{tpu_custom_call.1} parent=5 // pred_check
        _
      $region30: #{tpu_custom_call.1} parent=5 // pred_check_branch
        %177 = sbr.rel (%p174) target = $region32
      $region31: #{tpu_custom_call.1} parent=5 // pred_region
        %s178 = ssub.s32 %s16, 1
        %s179 = sand.u32 %s29, 1
        %s180 = scalar_lea.sflag [#allocation3], %s179
        %s181 = sand.u32 %s29, 1
        %s182 = smul.addr %s181, 304
        %s183 = scalar_lea.vmem [#allocation2], %s182
        // Predicated region
        $region33: #{tpu_custom_call.1} parent=31 // pred_check
          %p184 = pneg %p42
        $region34: #{tpu_custom_call.1} parent=31 // pred_check_branch
          %186 = sbr.rel (%p184) target = $region36
        $region35: #{tpu_custom_call.1} parent=31 // pred_region
          %187 = dma.done %s180, 4864
        $region36: #{tpu_custom_call.1} parent=31 // pred_fallthru
          _
        // Predicated region
        $region37: #{tpu_custom_call.1} parent=31 // pred_check
          %p188 = pneg %p63
        $region38: #{tpu_custom_call.1} parent=31 // pred_check_branch
          %190 = sbr.rel (%p188) target = $region40
        $region39: #{tpu_custom_call.1} parent=31 // pred_region
          %191 = dma.done [#allocation6], 2048
        $region40: #{tpu_custom_call.1} parent=31 // pred_fallthru
          _
        %s192 = sand.u32 %s29, 1
        %s193 = scalar_lea.sflag [#allocation3], %s192
        %s194 = sand.u32 %s29, 1
        %s195 = smul.addr %s194, 304
        %s196 = scalar_lea.vmem [#allocation2], %s195
        %p197 = pneg %p42
        %p198 = pneg %p39
        %p199 = pneg %p63
        %p200 = pneg %p60
        %p201 = pneg %p84
        %p202 = pneg %p81
        %p203 = pneg %p110
        %p204 = pneg %p107
        %s205 = sand.u32 %s97, 1
        %s206 = scalar_lea.sflag [#allocation4], %s205
        %s207 = sand.u32 %s97, 1
        %s208 = smul.addr %s207, 304
        %s209 = scalar_lea.vmem [#allocation7], %s208
        %s210 = smul.u32 38, %s21
        %s211 = ssub.s32 75, %s210
        %p212 = scmp.lt.s32.totalorder %s211, 38
        %s213 = scalar_select %p212, %s211, 38
        %s214 = smul.u32 128, %s213
        %s215 = smul.u32 38, %s21
        %s216 = ssub.s32 75, %s215
        %p217 = scmp.lt.s32.totalorder %s216, 38
        %s218 = scalar_select %p217, %s216, 38
        %s219 = smul.u32 128, %s218
        %v220 = vld [vmem:[%s183] sm:$0xff]
        %v221 = vld [vmem:[%s183 + $0x8] sm:$0xff]
        %v222 = vld [vmem:[%s183 + $0x10] sm:$0xff]
        %v223 = vld [vmem:[%s183 + $0x18] sm:$0xff]
        %v224 = vld [vmem:[%s183 + $0x20] sm:$0xff]
        %v225 = vld [vmem:[%s183 + $0x28] sm:$0xff]
        %v226 = vld [vmem:[%s183 + $0x30] sm:$0xff]
        %v227 = vld [vmem:[%s183 + $0x38] sm:$0xff]
        %v228 = vld [vmem:[%s183 + $0x40] sm:$0xff]
        %v229 = vld [vmem:[%s183 + $0x48] sm:$0xff]
        %v230 = vld [vmem:[%s183 + $0x50] sm:$0xff]
        %v231 = vld [vmem:[%s183 + $0x58] sm:$0xff]
        %v232 = vld [vmem:[%s183 + $0x60] sm:$0xff]
        %v233 = vld [vmem:[%s183 + $0x68] sm:$0xff]
        %v234 = vld [vmem:[%s183 + $0x70] sm:$0xff]
        %v235 = vld [vmem:[%s183 + $0x78] sm:$0xff]
        %v236 = vld [vmem:[%s183 + $0x80] sm:$0xff]
        %v237 = vld [vmem:[%s183 + $0x88] sm:$0xff]
        %v238 = vld [vmem:[%s183 + $0x90] sm:$0xff]
        %v239 = vld [vmem:[%s183 + $0x98] sm:$0xff]
        %v240 = vld [vmem:[%s183 + $0xa0] sm:$0xff]
        %v241 = vld [vmem:[%s183 + $0xa8] sm:$0xff]
        %v242 = vld [vmem:[%s183 + $0xb0] sm:$0xff]
        %v243 = vld [vmem:[%s183 + $0xb8] sm:$0xff]
        %v244 = vld [vmem:[%s183 + $0xc0] sm:$0xff]
        %v245 = vld [vmem:[%s183 + $0xc8] sm:$0xff]
        %v246 = vld [vmem:[%s183 + $0xd0] sm:$0xff]
        %v247 = vld [vmem:[%s183 + $0xd8] sm:$0xff]
        %v248 = vld [vmem:[%s183 + $0xe0] sm:$0xff]
        %v249 = vld [vmem:[%s183 + $0xe8] sm:$0xff]
        %v250 = vld [vmem:[%s183 + $0xf0] sm:$0xff]
        %v251 = vld [vmem:[%s183 + $0xf8] sm:$0xff]
        %v252 = vld [vmem:[%s183 + $0x100] sm:$0xff]
        %v253 = vld [vmem:[%s183 + $0x108] sm:$0xff]
        %v254 = vld [vmem:[%s183 + $0x110] sm:$0xff]
        %v255 = vld [vmem:[%s183 + $0x118] sm:$0xff]
        %v256 = vld [vmem:[%s183 + $0x120] sm:$0xff]
        %v257 = vld [vmem:[%s183 + $0x128] sm:$0xff]
        %v258 = vld [vmem:[#allocation5] sm:$0xff]
        %v259 = vld [vmem:[#allocation5 + $0x8] sm:$0xff]
        %v260 = vld [vmem:[#allocation5 + $0x10] sm:$0xff]
        %v261 = vld [vmem:[#allocation5 + $0x18] sm:$0xff]
        %v262 = vld [vmem:[#allocation5 + $0x20] sm:$0xff]
        %v263 = vld [vmem:[#allocation5 + $0x28] sm:$0xff]
        %v264 = vld [vmem:[#allocation5 + $0x30] sm:$0xff]
        %v265 = vld [vmem:[#allocation5 + $0x38] sm:$0xff]
        %v266 = vld [vmem:[#allocation5 + $0x40] sm:$0xff]
        %v267 = vld [vmem:[#allocation5 + $0x48] sm:$0xff]
        %v268 = vld [vmem:[#allocation5 + $0x50] sm:$0xff]
        %v269 = vld [vmem:[#allocation5 + $0x58] sm:$0xff]
        %v270 = vld [vmem:[#allocation5 + $0x60] sm:$0xff]
        %v271 = vld [vmem:[#allocation5 + $0x68] sm:$0xff]
        %v272 = vld [vmem:[#allocation5 + $0x70] sm:$0xff]
        %v273 = vld [vmem:[#allocation5 + $0x78] sm:$0xff]
        %274 = vmatprep.subr.mxu0 0.0
        %275 = vmatpush1.msra.mxu0 %v258
        %276 = vmatprep.subr.mxu0 0.0
        %277 = vmatpush1.msra.mxu0 %v259
        %278 = vmatprep.subr.mxu0 0.0
        %279 = vmatpush1.msra.mxu0 %v260
        %280 = vmatprep.subr.mxu0 0.0
        %281 = vmatpush1.msra.mxu0 %v261
        %282 = vmatprep.subr.mxu0 0.0
        %283 = vmatpush1.msra.mxu0 %v262
        %284 = vmatprep.subr.mxu0 0.0
        %285 = vmatpush1.msra.mxu0 %v263
        %286 = vmatprep.subr.mxu0 0.0
        %287 = vmatpush1.msra.mxu0 %v264
        %288 = vmatprep.subr.mxu0 0.0
        %289 = vmatpush1.msra.mxu0 %v265
        %290 = vmatprep.subr.mxu0 0.0
        %291 = vmatpush1.msra.mxu0 %v266
        %292 = vmatprep.subr.mxu0 0.0
        %293 = vmatpush1.msra.mxu0 %v267
        %294 = vmatprep.subr.mxu0 0.0
        %295 = vmatpush1.msra.mxu0 %v268
        %296 = vmatprep.subr.mxu0 0.0
        %297 = vmatpush1.msra.mxu0 %v269
        %298 = vmatprep.subr.mxu0 0.0
        %299 = vmatpush1.msra.mxu0 %v270
        %300 = vmatprep.subr.mxu0 0.0
        %301 = vmatpush1.msra.mxu0 %v271
        %302 = vmatprep.subr.mxu0 0.0
        %303 = vmatpush1.msra.mxu0 %v272
        %304 = vmatprep.subr.mxu0 0.0
        %305 = vmatpush1.msra.mxu0 %v273
        %306 = vmatprep.subr.mxu0 0.0
        %307 = vmatpush1.msra.mxu0 0.0
        %308 = vmatprep.subr.mxu0 0.0
        %309 = vmatpush1.msra.mxu0 0.0
        %310 = vmatprep.subr.mxu0 0.0
        %311 = vmatpush1.msra.mxu0 0.0
        %312 = vmatprep.subr.mxu0 0.0
        %313 = vmatpush1.msra.mxu0 0.0
        %314 = vmatprep.subr.mxu0 0.0
        %315 = vmatpush1.msra.mxu0 0.0
        %316 = vmatprep.subr.mxu0 0.0
        %317 = vmatpush1.msra.mxu0 0.0
        %318 = vmatprep.subr.mxu0 0.0
        %319 = vmatpush1.msra.mxu0 0.0
        %320 = vmatprep.subr.mxu0 0.0
        %321 = vmatpush1.msra.mxu0 0.0
        %322 = vmatprep.subr.mxu0 0.0
        %323 = vmatpush1.msra.mxu0 0.0
        %324 = vmatprep.subr.mxu0 0.0
        %325 = vmatpush1.msra.mxu0 0.0
        %326 = vmatprep.subr.mxu0 0.0
        %327 = vmatpush1.msra.mxu0 0.0
        %328 = vmatprep.subr.mxu0 0.0
        %329 = vmatpush1.msra.mxu0 0.0
        %330 = vmatprep.subr.mxu0 0.0
        %331 = vmatpush1.msra.mxu0 0.0
        %332 = vmatprep.subr.mxu0 0.0
        %333 = vmatpush1.msra.mxu0 0.0
        %334 = vmatprep.subr.mxu0 0.0
        %335 = vmatpush1.msra.mxu0 0.0
        %336 = vmatprep.subr.mxu0 0.0
        %337 = vmatpush1.msra.mxu0 0.0
        %338 = vmatprep.mubr.f32.mxu0 0.0
        %339 = vmatmul.mubr.f32.gmra.mrb[0].mxu0 %v220
        %v340 = vpop.f32.mrb[0].mxu0
        %v341 = vadd.f32 0.0, %v340
        %v342 = vpop.f32.mrb[0].mxu0
        %343 = vmatprep.mubr.f32.mxu0 0.0
        %344 = vmatmul.mubr.f32.gmra.mrb[0].mxu0 %v221
        %v345 = vpop.f32.mrb[0].mxu0
        %v346 = vadd.f32 0.0, %v345
        %v347 = vpop.f32.mrb[0].mxu0
        %348 = vmatprep.mubr.f32.mxu0 0.0
        %349 = vmatmul.mubr.f32.gmra.mrb[0].mxu0 %v222
        %v350 = vpop.f32.mrb[0].mxu0
        %v351 = vadd.f32 0.0, %v350
        %v352 = vpop.f32.mrb[0].mxu0
        %353 = vmatprep.mubr.f32.mxu0 0.0
        %354 = vmatmul.mubr.f32.gmra.mrb[0].mxu0 %v223
        %v355 = vpop.f32.mrb[0].mxu0
        %v356 = vadd.f32 0.0, %v355
        %v357 = vpop.f32.mrb[0].mxu0
        %358 = vmatprep.mubr.f32.mxu0 0.0
        %359 = vmatmul.mubr.f32.gmra.mrb[0].mxu0 %v224
        %v360 = vpop.f32.mrb[0].mxu0
        %v361 = vadd.f32 0.0, %v360
        %v362 = vpop.f32.mrb[0].mxu0
        %363 = vmatprep.mubr.f32.mxu0 0.0
        %364 = vmatmul.mubr.f32.gmra.mrb[0].mxu0 %v225
        %v365 = vpop.f32.mrb[0].mxu0
        %v366 = vadd.f32 0.0, %v365
        %v367 = vpop.f32.mrb[0].mxu0
        %368 = vmatprep.mubr.f32.mxu0 0.0
        %369 = vmatmul.mubr.f32.gmra.mrb[0].mxu0 %v226
        %v370 = vpop.f32.mrb[0].mxu0
        %v371 = vadd.f32 0.0, %v370
        %v372 = vpop.f32.mrb[0].mxu0
        %373 = vmatprep.mubr.f32.mxu0 0.0
        %374 = vmatmul.mubr.f32.gmra.mrb[0].mxu0 %v227
        %v375 = vpop.f32.mrb[0].mxu0
        %v376 = vadd.f32 0.0, %v375
        %v377 = vpop.f32.mrb[0].mxu0
        %378 = vmatprep.mubr.f32.mxu0 0.0
        %379 = vmatmul.mubr.f32.gmra.mrb[0].mxu0 %v228
        %v380 = vpop.f32.mrb[0].mxu0
        %v381 = vadd.f32 0.0, %v380
        %v382 = vpop.f32.mrb[0].mxu0
        %383 = vmatprep.mubr.f32.mxu0 0.0
        %384 = vmatmul.mubr.f32.gmra.mrb[0].mxu0 %v229
        %v385 = vpop.f32.mrb[0].mxu0
        %v386 = vadd.f32 0.0, %v385
        %v387 = vpop.f32.mrb[0].mxu0
        %388 = vmatprep.mubr.f32.mxu0 0.0
        %389 = vmatmul.mubr.f32.gmra.mrb[0].mxu0 %v230
        %v390 = vpop.f32.mrb[0].mxu0
        %v391 = vadd.f32 0.0, %v390
        %v392 = vpop.f32.mrb[0].mxu0
        %393 = vmatprep.mubr.f32.mxu0 0.0
        %394 = vmatmul.mubr.f32.gmra.mrb[0].mxu0 %v231
        %v395 = vpop.f32.mrb[0].mxu0
        %v396 = vadd.f32 0.0, %v395
        %v397 = vpop.f32.mrb[0].mxu0
        %398 = vmatprep.mubr.f32.mxu0 0.0
        %399 = vmatmul.mubr.f32.gmra.mrb[0].mxu0 %v232
        %v400 = vpop.f32.mrb[0].mxu0
        %v401 = vadd.f32 0.0, %v400
        %v402 = vpop.f32.mrb[0].mxu0
        %403 = vmatprep.mubr.f32.mxu0 0.0
        %404 = vmatmul.mubr.f32.gmra.mrb[0].mxu0 %v233
        %v405 = vpop.f32.mrb[0].mxu0
        %v406 = vadd.f32 0.0, %v405
        %v407 = vpop.f32.mrb[0].mxu0
        %408 = vmatprep.mubr.f32.mxu0 0.0
        %409 = vmatmul.mubr.f32.gmra.mrb[0].mxu0 %v234
        %v410 = vpop.f32.mrb[0].mxu0
        %v411 = vadd.f32 0.0, %v410
        %v412 = vpop.f32.mrb[0].mxu0
        %413 = vmatprep.mubr.f32.mxu0 0.0
        %414 = vmatmul.mubr.f32.gmra.mrb[0].mxu0 %v235
        %v415 = vpop.f32.mrb[0].mxu0
        %v416 = vadd.f32 0.0, %v415
        %v417 = vpop.f32.mrb[0].mxu0
        %418 = vmatprep.mubr.f32.mxu0 0.0
        %419 = vmatmul.mubr.f32.gmra.mrb[0].mxu0 %v236
        %v420 = vpop.f32.mrb[0].mxu0
        %v421 = vadd.f32 0.0, %v420
        %v422 = vpop.f32.mrb[0].mxu0
        %423 = vmatprep.mubr.f32.mxu0 0.0
        %424 = vmatmul.mubr.f32.gmra.mrb[0].mxu0 %v237
        %v425 = vpop.f32.mrb[0].mxu0
        %v426 = vadd.f32 0.0, %v425
        %v427 = vpop.f32.mrb[0].mxu0
        %428 = vmatprep.mubr.f32.mxu0 0.0
        %429 = vmatmul.mubr.f32.gmra.mrb[0].mxu0 %v238
        %v430 = vpop.f32.mrb[0].mxu0
        %v431 = vadd.f32 0.0, %v430
        %v432 = vpop.f32.mrb[0].mxu0
        %433 = vmatprep.mubr.f32.mxu0 0.0
        %434 = vmatmul.mubr.f32.gmra.mrb[0].mxu0 %v239
        %v435 = vpop.f32.mrb[0].mxu0
        %v436 = vadd.f32 0.0, %v435
        %v437 = vpop.f32.mrb[0].mxu0
        %438 = vmatprep.mubr.f32.mxu0 0.0
        %439 = vmatmul.mubr.f32.gmra.mrb[0].mxu0 %v240
        %v440 = vpop.f32.mrb[0].mxu0
        %v441 = vadd.f32 0.0, %v440
        %v442 = vpop.f32.mrb[0].mxu0
        %443 = vmatprep.mubr.f32.mxu0 0.0
        %444 = vmatmul.mubr.f32.gmra.mrb[0].mxu0 %v241
        %v445 = vpop.f32.mrb[0].mxu0
        %v446 = vadd.f32 0.0, %v445
        %v447 = vpop.f32.mrb[0].mxu0
        %448 = vmatprep.mubr.f32.mxu0 0.0
        %449 = vmatmul.mubr.f32.gmra.mrb[0].mxu0 %v242
        %v450 = vpop.f32.mrb[0].mxu0
        %v451 = vadd.f32 0.0, %v450
        %v452 = vpop.f32.mrb[0].mxu0
        %453 = vmatprep.mubr.f32.mxu0 0.0
        %454 = vmatmul.mubr.f32.gmra.mrb[0].mxu0 %v243
        %v455 = vpop.f32.mrb[0].mxu0
        %v456 = vadd.f32 0.0, %v455
        %v457 = vpop.f32.mrb[0].mxu0
        %458 = vmatprep.mubr.f32.mxu0 0.0
        %459 = vmatmul.mubr.f32.gmra.mrb[0].mxu0 %v244
        %v460 = vpop.f32.mrb[0].mxu0
        %v461 = vadd.f32 0.0, %v460
        %v462 = vpop.f32.mrb[0].mxu0
        %463 = vmatprep.mubr.f32.mxu0 0.0
        %464 = vmatmul.mubr.f32.gmra.mrb[0].mxu0 %v245
        %v465 = vpop.f32.mrb[0].mxu0
        %v466 = vadd.f32 0.0, %v465
        %v467 = vpop.f32.mrb[0].mxu0
        %468 = vmatprep.mubr.f32.mxu0 0.0
        %469 = vmatmul.mubr.f32.gmra.mrb[0].mxu0 %v246
        %v470 = vpop.f32.mrb[0].mxu0
        %v471 = vadd.f32 0.0, %v470
        %v472 = vpop.f32.mrb[0].mxu0
        %473 = vmatprep.mubr.f32.mxu0 0.0
        %474 = vmatmul.mubr.f32.gmra.mrb[0].mxu0 %v247
        %v475 = vpop.f32.mrb[0].mxu0
        %v476 = vadd.f32 0.0, %v475
        %v477 = vpop.f32.mrb[0].mxu0
        %478 = vmatprep.mubr.f32.mxu0 0.0
        %479 = vmatmul.mubr.f32.gmra.mrb[0].mxu0 %v248
        %v480 = vpop.f32.mrb[0].mxu0
        %v481 = vadd.f32 0.0, %v480
        %v482 = vpop.f32.mrb[0].mxu0
        %483 = vmatprep.mubr.f32.mxu0 0.0
        %484 = vmatmul.mubr.f32.gmra.mrb[0].mxu0 %v249
        %v485 = vpop.f32.mrb[0].mxu0
        %v486 = vadd.f32 0.0, %v485
        %v487 = vpop.f32.mrb[0].mxu0
        %488 = vmatprep.mubr.f32.mxu0 0.0
        %489 = vmatmul.mubr.f32.gmra.mrb[0].mxu0 %v250
        %v490 = vpop.f32.mrb[0].mxu0
        %v491 = vadd.f32 0.0, %v490
        %v492 = vpop.f32.mrb[0].mxu0
        %493 = vmatprep.mubr.f32.mxu0 0.0
        %494 = vmatmul.mubr.f32.gmra.mrb[0].mxu0 %v251
        %v495 = vpop.f32.mrb[0].mxu0
        %v496 = vadd.f32 0.0, %v495
        %v497 = vpop.f32.mrb[0].mxu0
        %498 = vmatprep.mubr.f32.mxu0 0.0
        %499 = vmatmul.mubr.f32.gmra.mrb[0].mxu0 %v252
        %v500 = vpop.f32.mrb[0].mxu0
        %v501 = vadd.f32 0.0, %v500
        %v502 = vpop.f32.mrb[0].mxu0
        %503 = vmatprep.mubr.f32.mxu0 0.0
        %504 = vmatmul.mubr.f32.gmra.mrb[0].mxu0 %v253
        %v505 = vpop.f32.mrb[0].mxu0
        %v506 = vadd.f32 0.0, %v505
        %v507 = vpop.f32.mrb[0].mxu0
        %508 = vmatprep.mubr.f32.mxu0 0.0
        %509 = vmatmul.mubr.f32.gmra.mrb[0].mxu0 %v254
        %v510 = vpop.f32.mrb[0].mxu0
        %v511 = vadd.f32 0.0, %v510
        %v512 = vpop.f32.mrb[0].mxu0
        %513 = vmatprep.mubr.f32.mxu0 0.0
        %514 = vmatmul.mubr.f32.gmra.mrb[0].mxu0 %v255
        %v515 = vpop.f32.mrb[0].mxu0
        %v516 = vadd.f32 0.0, %v515
        %v517 = vpop.f32.mrb[0].mxu0
        %518 = vmatprep.mubr.f32.mxu0 0.0
        %519 = vmatmul.mubr.f32.gmra.mrb[0].mxu0 %v256
        %v520 = vpop.f32.mrb[0].mxu0
        %v521 = vadd.f32 0.0, %v520
        %v522 = vpop.f32.mrb[0].mxu0
        %523 = vmatprep.mubr.f32.mxu0 0.0
        %524 = vmatmul.mubr.f32.gmra.mrb[0].mxu0 %v257
        %v525 = vpop.f32.mrb[0].mxu0
        %v526 = vadd.f32 0.0, %v525
        %v527 = vpop.f32.mrb[0].mxu0
        %528 = vdwg.mxu0
        %v529 = vadd.f32 %v220, %v341
        %v530 = vadd.f32 %v221, %v346
        %v531 = vadd.f32 %v222, %v351
        %v532 = vadd.f32 %v223, %v356
        %v533 = vadd.f32 %v224, %v361
        %v534 = vadd.f32 %v225, %v366
        %v535 = vadd.f32 %v226, %v371
        %v536 = vadd.f32 %v227, %v376
        %v537 = vadd.f32 %v228, %v381
        %v538 = vadd.f32 %v229, %v386
        %v539 = vadd.f32 %v230, %v391
        %v540 = vadd.f32 %v231, %v396
        %v541 = vadd.f32 %v232, %v401
        %v542 = vadd.f32 %v233, %v406
        %v543 = vadd.f32 %v234, %v411
        %v544 = vadd.f32 %v235, %v416
        %v545 = vadd.f32 %v236, %v421
        %v546 = vadd.f32 %v237, %v426
        %v547 = vadd.f32 %v238, %v431
        %v548 = vadd.f32 %v239, %v436
        %v549 = vadd.f32 %v240, %v441
        %v550 = vadd.f32 %v241, %v446
        %v551 = vadd.f32 %v242, %v451
        %v552 = vadd.f32 %v243, %v456
        %v553 = vadd.f32 %v244, %v461
        %v554 = vadd.f32 %v245, %v466
        %v555 = vadd.f32 %v246, %v471
        %v556 = vadd.f32 %v247, %v476
        %v557 = vadd.f32 %v248, %v481
        %v558 = vadd.f32 %v249, %v486
        %v559 = vadd.f32 %v250, %v491
        %v560 = vadd.f32 %v251, %v496
        %v561 = vadd.f32 %v252, %v501
        %v562 = vadd.f32 %v253, %v506
        %v563 = vadd.f32 %v254, %v511
        %v564 = vadd.f32 %v255, %v516
        %v565 = vadd.f32 %v256, %v521
        %v566 = vadd.f32 %v257, %v526
        %v567 = vld [vmem:[%s2] sm:$0x1]
        %v569 = vlaneseq
        %v570 = vshrl.u32 %v569, 7
        %v571 = vsub.s32 0, %v570
        %v572 = vrot.slane %v567, %v571
        %v574 = vadd.f32 %v529, %v572
        %v575 = vadd.f32 %v530, %v572
        %v576 = vadd.f32 %v531, %v572
        %v577 = vadd.f32 %v532, %v572
        %v578 = vadd.f32 %v533, %v572
        %v579 = vadd.f32 %v534, %v572
        %v580 = vadd.f32 %v535, %v572
        %v581 = vadd.f32 %v536, %v572
        %v582 = vadd.f32 %v537, %v572
        %v583 = vadd.f32 %v538, %v572
        %v584 = vadd.f32 %v539, %v572
        %v585 = vadd.f32 %v540, %v572
        %v586 = vadd.f32 %v541, %v572
        %v587 = vadd.f32 %v542, %v572
        %v588 = vadd.f32 %v543, %v572
        %v589 = vadd.f32 %v544, %v572
        %v590 = vadd.f32 %v545, %v572
        %v591 = vadd.f32 %v546, %v572
        %v592 = vadd.f32 %v547, %v572
        %v593 = vadd.f32 %v548, %v572
        %v594 = vadd.f32 %v549, %v572
        %v595 = vadd.f32 %v550, %v572
        %v596 = vadd.f32 %v551, %v572
        %v597 = vadd.f32 %v552, %v572
        %v598 = vadd.f32 %v553, %v572
        %v599 = vadd.f32 %v554, %v572
        %v600 = vadd.f32 %v555, %v572
        %v601 = vadd.f32 %v556, %v572
        %v602 = vadd.f32 %v557, %v572
        %v603 = vadd.f32 %v558, %v572
        %v604 = vadd.f32 %v559, %v572
        %v605 = vadd.f32 %v560, %v572
        %v606 = vadd.f32 %v561, %v572
        %v607 = vadd.f32 %v562, %v572
        %v608 = vadd.f32 %v563, %v572
        %v609 = vadd.f32 %v564, %v572
        %v610 = vadd.f32 %v565, %v572
        %v611 = vadd.f32 %v566, %v572
        %612 = vst [vmem:[%s209] sm:$0xff] %v574
        %613 = vst [vmem:[%s209 + $0x8] sm:$0xff] %v575
        %614 = vst [vmem:[%s209 + $0x10] sm:$0xff] %v576
        %615 = vst [vmem:[%s209 + $0x18] sm:$0xff] %v577
        %616 = vst [vmem:[%s209 + $0x20] sm:$0xff] %v578
        %617 = vst [vmem:[%s209 + $0x28] sm:$0xff] %v579
        %618 = vst [vmem:[%s209 + $0x30] sm:$0xff] %v580
        %619 = vst [vmem:[%s209 + $0x38] sm:$0xff] %v581
        %620 = vst [vmem:[%s209 + $0x40] sm:$0xff] %v582
        %621 = vst [vmem:[%s209 + $0x48] sm:$0xff] %v583
        %622 = vst [vmem:[%s209 + $0x50] sm:$0xff] %v584
        %623 = vst [vmem:[%s209 + $0x58] sm:$0xff] %v585
        %624 = vst [vmem:[%s209 + $0x60] sm:$0xff] %v586
        %625 = vst [vmem:[%s209 + $0x68] sm:$0xff] %v587
        %626 = vst [vmem:[%s209 + $0x70] sm:$0xff] %v588
        %627 = vst [vmem:[%s209 + $0x78] sm:$0xff] %v589
        %628 = vst [vmem:[%s209 + $0x80] sm:$0xff] %v590
        %629 = vst [vmem:[%s209 + $0x88] sm:$0xff] %v591
        %630 = vst [vmem:[%s209 + $0x90] sm:$0xff] %v592
        %631 = vst [vmem:[%s209 + $0x98] sm:$0xff] %v593
        %632 = vst [vmem:[%s209 + $0xa0] sm:$0xff] %v594
        %633 = vst [vmem:[%s209 + $0xa8] sm:$0xff] %v595
        %634 = vst [vmem:[%s209 + $0xb0] sm:$0xff] %v596
        %635 = vst [vmem:[%s209 + $0xb8] sm:$0xff] %v597
        %636 = vst [vmem:[%s209 + $0xc0] sm:$0xff] %v598
        %637 = vst [vmem:[%s209 + $0xc8] sm:$0xff] %v599
        %638 = vst [vmem:[%s209 + $0xd0] sm:$0xff] %v600
        %639 = vst [vmem:[%s209 + $0xd8] sm:$0xff] %v601
        %640 = vst [vmem:[%s209 + $0xe0] sm:$0xff] %v602
        %641 = vst [vmem:[%s209 + $0xe8] sm:$0xff] %v603
        %642 = vst [vmem:[%s209 + $0xf0] sm:$0xff] %v604
        %643 = vst [vmem:[%s209 + $0xf8] sm:$0xff] %v605
        %644 = vst [vmem:[%s209 + $0x100] sm:$0xff] %v606
        %645 = vst [vmem:[%s209 + $0x108] sm:$0xff] %v607
        %646 = vst [vmem:[%s209 + $0x110] sm:$0xff] %v608
        %647 = vst [vmem:[%s209 + $0x118] sm:$0xff] %v609
        %648 = vst [vmem:[%s209 + $0x120] sm:$0xff] %v610
        %649 = vst [vmem:[%s209 + $0x128] sm:$0xff] %v611
        %s650 = sand.u32 %s97, 1
        %s651 = scalar_lea.sflag [#allocation4], %s650
        %s652 = sand.u32 %s97, 1
        %s653 = smul.addr %s652, 304
        %s654 = scalar_lea.vmem [#allocation7], %s653
        // Predicated region
        $region41: #{tpu_custom_call.1} parent=31 // pred_check
          %p655 = pneg %p107
        $region42: #{tpu_custom_call.1} parent=31 // pred_check_branch
          %657 = sbr.rel (%p655) target = $region44
        $region43: #{tpu_custom_call.1} parent=31 // pred_region
          %s658 = smul.u32 38, %s21
          %s659 = ssub.s32 75, %s658
          %p660 = scmp.lt.s32.totalorder %s659, 38
          %s661 = scalar_select %p660, %s659, 38
          %s662 = smul.u32 128, %s661
          %s664 = ssub.s32 4864, %s662
          %665 = vsyncadd %s651, %s664
          %p666 = scmp.ne.s32.totalorder 0, %s662
          %s667 = smul.addr %s658, 128
          %s668 = scalar_lea.hbm %s3, %s667
          %s669 = smul.u32 8, %s661
          %s670 = sshll.u32 %s654, 4
          %s671 = int_to_ptr.vmem [resolvable:$true] %s670
          %s672 = sshll.u32 %s669, 4
          %676 = dma.vmem_to_hbm [thread:$0]  (%p666), %s671, %s672, %s668, %s651, 128, 128, 8
        $region44: #{tpu_custom_call.1} parent=31 // pred_fallthru
          _
      $region32: #{tpu_custom_call.1} parent=5 // pred_fallthru
        _
      %p677 = scmp.le.s32.totalorder 2, %s16
      // Predicated region
      $region45: #{tpu_custom_call.1} parent=5 // pred_check
        %p678 = pneg %p677
      $region46: #{tpu_custom_call.1} parent=5 // pred_check_branch
        %680 = sbr.rel (%p678) target = $region48
      $region47: #{tpu_custom_call.1} parent=5 // pred_region
        %s681 = ssub.s32 %s16, 2
        // Predicated region
        $region49: #{tpu_custom_call.1} parent=47 // pred_check
          %p682 = pneg %p113
        $region50: #{tpu_custom_call.1} parent=47 // pred_check_branch
          %684 = sbr.rel (%p682) target = $region52
        $region51: #{tpu_custom_call.1} parent=47 // pred_region
          %s685 = sand.u32 %s98, 1
          %s686 = scalar_lea.sflag [#allocation4], %s685
          %s687 = sand.u32 %s98, 1
          %s688 = smul.addr %s687, 304
          %s689 = scalar_lea.vmem [#allocation7], %s688
          %690 = dma.done %s686, 4864
        $region52: #{tpu_custom_call.1} parent=47 // pred_fallthru
          _
      $region48: #{tpu_custom_call.1} parent=5 // pred_fallthru
        _
    $region6: #{tpu_custom_call.1} parent=1 // loop_footer
      %s20 = sadd.s32 1, %s16
    $region7: #{tpu_custom_call.1} parent=1 // loop_footer_branch
      %15 = sbr.rel target = $region3
    $region8: #{tpu_custom_call.1} parent=1 // loop_exit
      _
    %691 = vsyncpa [#allocation3], 1
    %s692 = scalar_lea.sflag [#allocation3], 1
    %693 = vsyncpa %s692, 1
    %694 = vsyncpa [#allocation6], 1
    %695 = vsyncpa [#allocation4], 1
    %s696 = scalar_lea.sflag [#allocation4], 1
    %697 = vsyncpa %s696, 1

</llo_original>
